<compile_context>
chip_gen: v5e
topology: v5e:2x2
jax: 0.10.0
libtpu: 0.0.40
codegen_flags: <defaults>
</compile_context>

<pallas_src>
import functools

import jax
import jax.numpy as jnp
from jax.experimental import pallas as pl
from jax.experimental.pallas import tpu as pltpu

_LANE = 128
_SUB = 8
_ACC_ROWS = 64          # resident accumulator rows (8 independent vreg streams)


def _sumsq_kernel(x_ref, o_ref, acc_ref, *, rows, fold, ragged):
    """Accumulate sum(x^2) over the (rows, 128) slab into o_ref[0, 0] (f32)."""
    i = pl.program_id(0)
    nsteps = pl.num_programs(0)
    tile_rows = x_ref.shape[0]

    @pl.when(i == 0)
    def _init():
        acc_ref[...] = jnp.zeros_like(acc_ref)

    def _accumulate(xblk):
        xf = xblk.astype(jnp.float32)
        x2 = xf * xf
        if fold > 0:
            # Fold the block down to (fold, 128) with pure VALU adds; fold/8
            # independent accumulation streams keep the loop throughput-bound.
            acc_ref[0:fold, :] += x2.reshape(tile_rows // fold, fold, _LANE).sum(axis=0)
        else:
            # Tiny-input fallback (tile_rows < 8): single sublane reduce.
            acc_ref[0:1, :] += jnp.sum(x2, axis=0, keepdims=True)

    if ragged:
        # Only the last block can extend past the end of the array; keep the
        # mask off the hot path (unmasked mul/add for all earlier blocks).
        @pl.when(i < nsteps - 1)
        def _full():
            _accumulate(x_ref[...])

        @pl.when(i == nsteps - 1)
        def _partial():
            xblk = x_ref[...]
            row_id = i * tile_rows + jax.lax.broadcasted_iota(
                jnp.int32, xblk.shape, 0)
            _accumulate(jnp.where(row_id < rows, xblk, jnp.zeros_like(xblk)))
    else:
        _accumulate(x_ref[...])

    @pl.when(i == nsteps - 1)
    def _finalize():
        # One cross-lane XLU reduce, epilogue only; scalar lands in SMEM.
        o_ref[0, 0] = jnp.sum(acc_ref[...])


def power_constraint_loss(x, maximum_power=1.0, exponent=2.0):
    """x: (N, C, ...) like the PyTorch module.  Returns scalar f32 loss."""
    assert x.ndim >= 2, "expects at least (N, C, ...)"
    n_channels = x.shape[1]
    total = x.size
    denom = total // n_channels           # number of terms the mean averages over
    itemsize = jnp.dtype(x.dtype).itemsize

    flat = x.reshape(-1)                  # contiguous reshape: free
    rows = total // _LANE
    tail = total - rows * _LANE

    # Sub-128-element tail: O(128) work, reduced in plain JAX (no padded copy
    # of the whole tensor).
    tail_ss = jnp.float32(0.0)
    if tail:
        tail_ss = jnp.sum(flat[rows * _LANE:].astype(jnp.float32) ** 2)

    if rows == 0:
        total_ss = tail_ss
    else:
        if tail:
            # TODO(synk): XLA may materialize this prefix slice; a fully
            # zero-copy misaligned path would DMA 1-D chunks from a
            # memory_space=pl.ANY ref manually.
            prefix = flat[: rows * _LANE]
        else:
            prefix = flat
        x2d = prefix.reshape(rows, _LANE)     # free lane-dense view

        # Block sizing: ~4 MiB per buffer (double buffered => 8 MiB VMEM),
        # rows aligned to the dtype's sublane packing (8 f32 / 16 bf16 / 32 i8).
        pack = _SUB * max(1, 4 // itemsize)
        target_rows = 8192 * max(1, 4 // itemsize)    # ~4 MiB for any dtype
        if rows >= target_rows:
            tile_rows = target_rows
        elif rows >= pack:
            tile_rows = (rows // pack) * pack
        elif rows >= _SUB:
            tile_rows = (rows // _SUB) * _SUB
        else:
            tile_rows = rows                  # tiny input: single full-extent block

        num_blocks = pl.cdiv(rows, tile_rows)
        ragged = (rows % tile_rows) != 0
        fold = next((f for f in (64, 32, 16, 8) if tile_rows % f == 0), 0)

        kernel = functools.partial(
            _sumsq_kernel, rows=rows, fold=fold, ragged=ragged)

        ss = pl.pallas_call(
            kernel,
            out_shape=jax.ShapeDtypeStruct((1, 1), jnp.float32),
            grid_spec=pltpu.PrefetchScalarGridSpec(
                num_scalar_prefetch=0,
                grid=(num_blocks,),
                in_specs=[pl.BlockSpec((tile_rows, _LANE), lambda i: (i, 0))],
                out_specs=pl.BlockSpec(memory_space=pltpu.MemorySpace.SMEM),
                scratch_shapes=[pltpu.VMEM((_ACC_ROWS, _LANE), jnp.float32)],
            ),
            compiler_params=pltpu.CompilerParams(
                dimension_semantics=("arbitrary",),
                vmem_limit_bytes=32 * 1024 * 1024,
            ),
            cost_estimate=pl.CostEstimate(
                flops=2 * rows * _LANE,
                transcendentals=0,
                bytes_accessed=rows * _LANE * itemsize + 4,
            ),
        )(x2d)
        total_ss = ss[0, 0]
        if tail:
            total_ss = total_ss + tail_ss

    # Scalar epilogue (matches the module's forward).
    avg_power = total_ss / jnp.float32(denom)
    ratio = avg_power / jnp.float32(maximum_power)
    exponent = float(exponent)
    if exponent == 2.0:
        error = ratio * ratio
    elif exponent == 1.0:
        error = ratio
    else:
        error = ratio ** jnp.float32(exponent)
    return jnp.abs(jnp.float32(1.0) - error)


def _reference(x, maximum_power=1.0, exponent=2.0):
    xf = x.astype(jnp.float32)
    avg_power = jnp.mean(jnp.sum(xf ** 2, axis=1))
    error = (avg_power / jnp.float32(maximum_power)) ** jnp.float32(exponent)
    return jnp.abs(1.0 - error)


if __name__ == "__main__":
    # Small NCHW input consistent with the module's forward.
    x = jax.random.normal(jax.random.PRNGKey(0), (2, 4, 16, 16), dtype=jnp.float32)
    loss = jax.block_until_ready(power_constraint_loss(x, maximum_power=1.0, exponent=2.0))
    ref = _reference(x, 1.0, 2.0)
    assert jnp.allclose(loss, ref, rtol=1e-5, atol=1e-5), (loss, ref)

    # rows (18) not a multiple of the tile (16): exercises the last-block-only mask.
    x2 = jax.random.normal(jax.random.PRNGKey(1), (2, 4, 18, 16), dtype=jnp.float32)
    loss2 = jax.block_until_ready(power_constraint_loss(x2, maximum_power=0.5, exponent=2.0))
    ref2 = _reference(x2, 0.5, 2.0)
    assert jnp.allclose(loss2, ref2, rtol=1e-4, atol=1e-4), (loss2, ref2)

    # total (150) not a multiple of 128: exercises the tail-in-JAX path (no concatenate),
    # plus a generic exponent.
    x3 = jax.random.normal(jax.random.PRNGKey(2), (2, 3, 5, 5), dtype=jnp.float32)
    loss3 = jax.block_until_ready(power_constraint_loss(x3, maximum_power=2.0, exponent=3.0))
    ref3 = _reference(x3, 2.0, 3.0)
    assert jnp.allclose(loss3, ref3, rtol=1e-4, atol=1e-5), (loss3, ref3)

    # bf16 input: exercises dtype-aware tiling with f32 accumulation.
    x4 = jax.random.normal(jax.random.PRNGKey(3), (2, 4, 16, 16), dtype=jnp.bfloat16)
    loss4 = jax.block_until_ready(power_constraint_loss(x4, maximum_power=1.0, exponent=2.0))
    ref4 = _reference(x4, 1.0, 2.0)
    assert jnp.allclose(loss4, ref4, rtol=1e-3, atol=1e-3), (loss4, ref4)

    print("KERNEL_OK")
</pallas_src>

<mosaic_0001>
module attributes {stable_mosaic.version = 11 : i64} {
  func.func @_sumsq_kernel(%arg0: i32, %arg1: memref<16x128xf32, #tpu.memory_space<vmem>>, %arg2: memref<1x1xf32, #tpu.memory_space<smem>>, %arg3: memref<64x128xf32, #tpu.memory_space<vmem>>) attributes {dimension_semantics = [#tpu.dimension_semantics<arbitrary>], iteration_bounds = array<i64: 1>, scalar_prefetch = 0 : i64, scratch_operands = 1 : i64, tpu.core_type = #tpu.core_type<tc>, window_params = [{transform_indices = @transform_0, window_bounds = array<i64: 16, 128>}, {transform_indices = @transform_1, window_bounds = array<i64: 1, 1>}]} {
    %c0_i32 = arith.constant 0 : i32
    %0 = arith.cmpi eq, %arg0, %c0_i32 : i32
    %1 = arith.extui %0 : i1 to i32
    %c0_i32_0 = arith.constant 0 : i32
    %2 = arith.cmpi ne, %1, %c0_i32_0 : i32
    scf.if %2 {
      %cst_8 = arith.constant 0.000000e+00 : f32
      %13 = vector.broadcast %cst_8 : f32 to vector<64x128xf32>
      %c0_9 = arith.constant 0 : index
      %c0_10 = arith.constant 0 : index
      %14 = vector.load %arg3[%c0_9, %c0_10] : memref<64x128xf32, #tpu.memory_space<vmem>>, vector<64x128xf32>
      tpu.vector_store %arg3[%c0_9, %c0_10], %13 {strides = array<i32>} : memref<64x128xf32, #tpu.memory_space<vmem>>, vector<64x128xf32>,
    } else {
    }
    %c0 = arith.constant 0 : index
    %c0_1 = arith.constant 0 : index
    %3 = vector.load %arg1[%c0, %c0_1] : memref<16x128xf32, #tpu.memory_space<vmem>>, vector<16x128xf32>
    %4 = arith.mulf %3, %3 : vector<16x128xf32>
    %c0_2 = arith.constant 0 : index
    %c0_3 = arith.constant 0 : index
    %5 = vector.load %arg3[%c0_2, %c0_3] : memref<64x128xf32, #tpu.memory_space<vmem>>, vector<16x128xf32>
    %6 = vector.shape_cast %4 : vector<16x128xf32> to vector<1x16x128xf32>
    %cst = arith.constant dense<0.000000e+00> : vector<16x128xf32>
    %7 = vector.multi_reduction <add>, %6, %cst [0] : vector<1x16x128xf32> to vector<16x128xf32>
    %8 = arith.addf %5, %7 : vector<16x128xf32>
    %c0_4 = arith.constant 0 : index
    %c0_5 = arith.constant 0 : index
    %9 = vector.load %arg3[%c0_4, %c0_5] : memref<64x128xf32, #tpu.memory_space<vmem>>, vector<16x128xf32>
    tpu.vector_store %arg3[%c0_4, %c0_5], %8 {strides = array<i32>} : memref<64x128xf32, #tpu.memory_space<vmem>>, vector<16x128xf32>,
    %c0_i32_6 = arith.constant 0 : i32
    %10 = arith.cmpi eq, %arg0, %c0_i32_6 : i32
    %11 = arith.extui %10 : i1 to i32
    %c0_i32_7 = arith.constant 0 : i32
    %12 = arith.cmpi ne, %11, %c0_i32_7 : i32
    scf.if %12 {
      %c0_8 = arith.constant 0 : index
      %c0_9 = arith.constant 0 : index
      %13 = vector.load %arg3[%c0_8, %c0_9] : memref<64x128xf32, #tpu.memory_space<vmem>>, vector<64x128xf32>
      %14 = vector.shape_cast %13 : vector<64x128xf32> to vector<1x64x128xf32>
      %cst_10 = arith.constant dense<0.000000e+00> : vector<1xf32>
      %15 = vector.multi_reduction <add>, %14, %cst_10 [1, 2] : vector<1x64x128xf32> to vector<1xf32>
      %16 = vector.shape_cast %15 : vector<1xf32> to vector<1x1x1xf32>
      %17 = vector.extract %16[0, 0, 0] : f32 from vector<1x1x1xf32>
      %c0_11 = arith.constant 0 : index
      %c0_12 = arith.constant 0 : index
      %18 = memref.load %arg2[%c0_11, %c0_12] : memref<1x1xf32, #tpu.memory_space<smem>>
      memref.store %17, %arg2[%c0_11, %c0_12] : memref<1x1xf32, #tpu.memory_space<smem>>
    } else {
    }
    return
  }
  func.func @transform_0(%arg0: i32) -> (i32, i32) {
    %c0_i32 = arith.constant 0 : i32
    %c0_i32_0 = arith.constant 0 : i32
    return %arg0, %c0_i32 : i32, i32
  }
  func.func @transform_1(%arg0: i32) -> (i32, i32) {
    %c0_i32 = arith.constant 0 : i32
    %c0_i32_0 = arith.constant 0 : i32
    %c0_i32_1 = arith.constant 0 : i32
    return %c0_i32, %c0_i32_0 : i32, i32
  }
}

</mosaic_0001>

<llo_original>
// kernel: tpu_custom_call.1
$region0: #{tpu_custom_call.1}
  #allocation0 [shape = 'u32[]', space=smem, size = 0x4, offset = 0x4, fixed_abs, tag = 'smem constant byte address 0x4 - core index']
  #allocation1 [shape = 'u32[72,128]{1,0:T(1,128)}', space=vmem, size = 0x9000, scoped, tag = 'internal scratch']
  #allocation2 [shape = 'f32[64,128]{1,0:T(8,128)}', space=vmem, size = 0x8000, scoped, tag = 'scratch operand']
  %s0 = inlined_call_operand.hbm [shape: f32[16,128], index: 0, kind: input, shape index: {}]
  %s1 = inlined_call_operand.hbm [shape: f32[1,1], index: 1, kind: output, shape index: {}]
  %s2 = sld [smem:[#allocation0]]
  $region26: #{tpu_custom_call.1} parent=0
    _
  %s4 = ssub.s32 1, %s2
  %s5 = scalar_select 0, %s4, %s2
  $region1: #{tpu_custom_call.1} parent=0
    #allocation3 [shape = 'u8[8192]{0}', space=vmem, size = 0x2000, scoped, tag = 'input window, operand 0, single buffered']
    #allocation4 [shape = 's32[1]{0}', space=sflag, size = 0x4, scoped, tag = 'scoped memory for tpu_custom_call.1']
    #allocation5 [shape = 's32[1]{0}', space=sflag, size = 0x4, scoped, tag = 'scoped memory for tpu_custom_call.1']
    #allocation6 [shape = 'u8[512]{0}', space=smem, size = 0x200, scoped, tag = 'output window, operand 0, single buffered']
    %6 = vsyncpa [#allocation4], 0
    %7 = vsyncpa [#allocation5], 0
    // Predicated region
    $region2: #{tpu_custom_call.1} parent=1 // pred_check
      _
    $region3: #{tpu_custom_call.1} parent=1 // pred_check_branch
      %9 = sbr.rel (0) target = $region5
    $region4: #{tpu_custom_call.1} parent=1 // pred_region
      %11 = vsyncadd [#allocation4], 0
      %s12 = sshll.u32 %s0, 4
      %s13 = int_to_ptr.hbm [resolvable:$true] %s12
      %s14 = sshll.u32 [#allocation3], 4
      %s15 = int_to_ptr.vmem [resolvable:$true] %s14
      %20 = dma.hbm_to_vmem [thread:$0]  %s13, 256, %s15, [#allocation4], 128, 128, 8
    $region5: #{tpu_custom_call.1} parent=1 // pred_fallthru
      _
    // Predicated region
    $region6: #{tpu_custom_call.1} parent=1 // pred_check
      _
    $region7: #{tpu_custom_call.1} parent=1 // pred_check_branch
      %22 = sbr.rel (0) target = $region9
    $region8: #{tpu_custom_call.1} parent=1 // pred_region
      %24 = dma.done [#allocation4], 256
    $region9: #{tpu_custom_call.1} parent=1 // pred_fallthru
      _
    %p25 = scmp.eq.s32.totalorder 0, 0
    // Predicated region
    $region10: #{tpu_custom_call.1} parent=1 // pred_check
      %p26 = pneg %p25
    $region11: #{tpu_custom_call.1} parent=1 // pred_check_branch
      %28 = sbr.rel (%p26) target = $region13
    $region12: #{tpu_custom_call.1} parent=1 // pred_region
      %29 = vst [vmem:[#allocation2] sm:$0xff] 0.0
      %30 = vst [vmem:[#allocation2 + $0x8] sm:$0xff] 0.0
      %31 = vst [vmem:[#allocation2 + $0x10] sm:$0xff] 0.0
      %32 = vst [vmem:[#allocation2 + $0x18] sm:$0xff] 0.0
      %33 = vst [vmem:[#allocation2 + $0x20] sm:$0xff] 0.0
      %34 = vst [vmem:[#allocation2 + $0x28] sm:$0xff] 0.0
      %35 = vst [vmem:[#allocation2 + $0x30] sm:$0xff] 0.0
      %36 = vst [vmem:[#allocation2 + $0x38] sm:$0xff] 0.0
    $region13: #{tpu_custom_call.1} parent=1 // pred_fallthru
      _
    %v37 = vld [vmem:[#allocation3] sm:$0xff]
    %v38 = vld [vmem:[#allocation3 + $0x8] sm:$0xff]
    %v39 = vmul.f32 %v37, %v37
    %v40 = vmul.f32 %v38, %v38
    %v41 = vld [vmem:[#allocation2] sm:$0xff]
    %v42 = vld [vmem:[#allocation2 + $0x8] sm:$0xff]
    %v43 = vadd.f32 %v39, 0.0
    %v44 = vadd.f32 %v40, 0.0
    %v45 = vadd.f32 %v41, %v43
    %v46 = vadd.f32 %v42, %v44
    %47 = vst [vmem:[#allocation2] sm:$0xff] %v45
    %48 = vst [vmem:[#allocation2 + $0x8] sm:$0xff] %v46
    // Predicated region
    $region14: #{tpu_custom_call.1} parent=1 // pred_check
      %p49 = pneg %p25
    $region15: #{tpu_custom_call.1} parent=1 // pred_check_branch
      %51 = sbr.rel (%p49) target = $region17
    $region16: #{tpu_custom_call.1} parent=1 // pred_region
      %v52 = vld [vmem:[#allocation2] sm:$0xff]
      %v53 = vld [vmem:[#allocation2 + $0x8] sm:$0xff]
      %v54 = vld [vmem:[#allocation2 + $0x10] sm:$0xff]
      %v55 = vld [vmem:[#allocation2 + $0x18] sm:$0xff]
      %v56 = vld [vmem:[#allocation2 + $0x20] sm:$0xff]
      %v57 = vld [vmem:[#allocation2 + $0x28] sm:$0xff]
      %v58 = vld [vmem:[#allocation2 + $0x30] sm:$0xff]
      %v59 = vld [vmem:[#allocation2 + $0x38] sm:$0xff]
      %v60 = vadd.f32 %v52, %v53
      %v61 = vadd.f32 %v60, %v54
      %v62 = vadd.f32 %v61, %v55
      %v63 = vadd.f32 %v62, %v56
      %v64 = vadd.f32 %v63, %v57
      %v65 = vadd.f32 %v64, %v58
      %v66 = vadd.f32 %v65, %v59
      %67 = vadd.xlane.f32.xlu0 %v66
      %v68 = vpop.xlane.xlu0 %67
      %v69 = vrot.slane %v68, 4
      %v70 = vadd.f32 %v68, %v69
      %v71 = vrot.slane %v70, 2
      %v72 = vadd.f32 %v70, %v71
      %v73 = vrot.slane %v72, 1
      %v74 = vadd.f32 %v72, %v73
      %s75 = vtos %v74
      %s76 = scalar_lea.smem [#allocation6], 0
      %77 = sst [smem:[%s76]] %s75
    $region17: #{tpu_custom_call.1} parent=1 // pred_fallthru
      _
    // Predicated region
    $region18: #{tpu_custom_call.1} parent=1 // pred_check
      _
    $region19: #{tpu_custom_call.1} parent=1 // pred_check_branch
      %79 = sbr.rel (0) target = $region21
    $region20: #{tpu_custom_call.1} parent=1 // pred_region
      %81 = vsyncadd [#allocation5], 0
      %s83 = sshll.u32 %s1, 4
      %s84 = int_to_ptr.hbm [resolvable:$true] %s83
      %86 = dma.smem_to_hbm [#allocation6], 16, %s84, [#allocation5]
    $region21: #{tpu_custom_call.1} parent=1 // pred_fallthru
      _
    // Predicated region
    $region22: #{tpu_custom_call.1} parent=1 // pred_check
      _
    $region23: #{tpu_custom_call.1} parent=1 // pred_check_branch
      %88 = sbr.rel (0) target = $region25
    $region24: #{tpu_custom_call.1} parent=1 // pred_region
      %90 = dma.done [#allocation5], 16
    $region25: #{tpu_custom_call.1} parent=1 // pred_fallthru
      _
    %91 = sfence
    %92 = vsyncpa [#allocation4], 1
    %93 = vsyncpa [#allocation5], 1

</llo_original>
